<compile_context>
chip_gen: v7x
topology: tpu7x:2x2x1
jax: 0.10.0
libtpu: 0.0.40
codegen_flags: <defaults>
</compile_context>

<pallas_src>
import jax
import jax.numpy as jnp
from jax.experimental import pallas as pl
from jax.experimental.pallas import tpu as pltpu


def _round_up(a, b):
    return (a + b - 1) // b * b


def _fairgnn_kernel(a_ref, xw_ref, bcat_ref, whead_ref, bhead_ref,
                    out_ref, acc_ref):
    k = pl.program_id(1)

    @pl.when(k == 0)
    def _():
        acc_ref[...] = jnp.zeros_like(acc_ref)

    # Single fused aggregation for both GraphConvs:
    #   acc += A_hat[i-tile, k-slab] @ XW[k-slab]
    # (bf16 MXU inputs, f32 accumulate; XW is precomputed in the wrapper).
    acc_ref[...] += jnp.dot(a_ref[...], xw_ref[...],
                            preferred_element_type=jnp.float32)

    @pl.when(k == pl.num_programs(1) - 1)
    def _():
        h = acc_ref[...] + bcat_ref[...]          # GraphConv biases [b_e | b_g]
        # Packed block-diagonal heads: col 0 = classifier(z), col 1 = est_fc(h_e).
        out = jnp.dot(h, whead_ref[...], preferred_element_type=jnp.float32)
        out_ref[...] = (out + bhead_ref[...]).astype(out_ref.dtype)


def fairgnn_forward(a_hat, x, params, *, tm=512, tk=1024):
    """Runs the fused, tiled FairGNN forward kernel. Returns (y, s)."""
    n, f = x.shape

    w_e, b_e = params["w_est_gc"], params["b_est_gc"]
    w_ef, b_ef = params["w_est_fc"], params["b_est_fc"]
    w_g, b_g = params["w_gnn_gc"], params["b_gnn_gc"]
    w_c, b_c = params["w_cls"], params["b_cls"]

    h_e = w_e.shape[1]           # args.hidden (estimator GCN hidden width)
    h_g = w_g.shape[1]           # args.num_hidden (GNN hidden width)
    h_cat = h_e + h_g
    h_pad = _round_up(h_cat, 128)   # lane-dense hidden width (128 in practice)

    # Pack the two GraphConv weight matrices / biases into one padded slab.
    w_cat = jnp.zeros((f, h_pad), jnp.float32)
    w_cat = w_cat.at[:, :h_e].set(w_e).at[:, h_e:h_cat].set(w_g)
    b_cat = jnp.zeros((1, h_pad), jnp.float32)
    b_cat = b_cat.at[:, :h_e].set(b_e).at[:, h_e:h_cat].set(b_g)

    # Block-diagonal packed heads -> single (N, 2) output: [:, 0]=y, [:, 1]=s.
    w_head = jnp.zeros((h_pad, 2), jnp.float32)
    w_head = w_head.at[:h_e, 1].set(w_ef[:, 0]).at[h_e:h_cat, 0].set(w_c[:, 0])
    b_head = jnp.concatenate([b_c, b_ef], axis=1).astype(jnp.float32)   # (1, 2)

    # --- Tile sizing -------------------------------------------------------
    n128 = _round_up(n, 128)
    tm = min(tm, n128)
    tk = min(tk, n128)
    # v7x megacore: the row axis is the only "parallel" grid dim; ensure at
    # least 2 row tiles whenever the graph is big enough so both TCs get work.
    if n128 >= 256 and (n128 + tm - 1) // tm < 2:
        tm = _round_up((n128 + 1) // 2, 128)

    # Pad each A_hat axis independently (rows -> tm multiple, cols -> tk
    # multiple); no lcm() blow-up and no f32 N_pad^2 intermediate.
    n_rows = _round_up(n, tm)
    n_cols = _round_up(n, tk)
    a_pad = jnp.pad(a_hat.astype(jnp.bfloat16),
                    ((0, n_rows - n), (0, n_cols - n)))

    # Hoisted fused feature transform (one XLA matmul, f32 accumulate, bf16
    # stream): XW = X @ [W_e | W_g].  Padded source rows contribute zeros.
    xw = (x.astype(jnp.float32) @ w_cat).astype(jnp.bfloat16)
    xw_pad = jnp.pad(xw, ((0, n_cols - n), (0, 0)))

    grid = (n_rows // tm, n_cols // tk)

    # VMEM budget (double-buffered bf16 A tile + bf16 XW slab, f32 acc);
    # keep the explicit limit comfortably under v7x's 64 MiB physical VMEM.
    est_vmem = (2 * tm * tk * 2 + 2 * tk * h_pad * 2 + tm * h_pad * 4
                + 2 * tm * 2 * 4 + 4 * h_pad * 4)
    vmem_limit = int(min(max(2 * est_vmem, 32 * 1024 * 1024), 48 * 1024 * 1024))

    # TODO(synk): block-sparse skipping of all-zero A_hat tiles (scalar-prefetched
    # block indices) not implemented; every tile is streamed densely.
    out = pl.pallas_call(
        _fairgnn_kernel,
        out_shape=jax.ShapeDtypeStruct((n_rows, 2), jnp.float32),
        grid_spec=pltpu.PrefetchScalarGridSpec(
            num_scalar_prefetch=0,
            grid=grid,
            in_specs=[
                pl.BlockSpec((tm, tk), lambda i, k: (i, k)),      # A_hat tile (bf16)
                pl.BlockSpec((tk, h_pad), lambda i, k: (k, 0)),   # XW slab (bf16)
                pl.BlockSpec((1, h_pad), lambda i, k: (0, 0)),    # [b_e | b_g]
                pl.BlockSpec((h_pad, 2), lambda i, k: (0, 0)),    # packed heads
                pl.BlockSpec((1, 2), lambda i, k: (0, 0)),        # head biases
            ],
            out_specs=pl.BlockSpec((tm, 2), lambda i, k: (i, 0)),
            scratch_shapes=[pltpu.VMEM((tm, h_pad), jnp.float32)],
        ),
        compiler_params=pltpu.CompilerParams(
            dimension_semantics=("parallel", "arbitrary"),
            vmem_limit_bytes=vmem_limit),
    )(a_pad, xw_pad, b_cat, w_head, b_head)

    y = out[:n, 0:1]
    s = out[:n, 1:2]
    return y, s


def _make_example(key, n, f, hid_est, nhid, density=0.1):
    keys = jax.random.split(key, 6)
    x = jax.random.normal(keys[0], (n, f), dtype=jnp.float32)

    logits = jax.random.uniform(keys[1], (n, n))
    adj = (logits < density).astype(jnp.float32)
    adj = jnp.maximum(adj, adj.T)
    adj = jnp.maximum(adj, jnp.eye(n, dtype=jnp.float32))
    dinv = 1.0 / jnp.sqrt(adj.sum(axis=1))
    a_hat = adj * dinv[:, None] * dinv[None, :]

    params = {
        # estimator = GCN(nfeat, args.hidden, 1, dropout)
        "w_est_gc": 0.1 * jax.random.normal(keys[2], (f, hid_est), jnp.float32),
        "b_est_gc": jnp.zeros((1, hid_est), jnp.float32),
        "w_est_fc": 0.1 * jax.random.normal(keys[3], (hid_est, 1), jnp.float32),
        "b_est_fc": 0.01 * jnp.ones((1, 1), jnp.float32),
        # GNN = GCN_Body(nfeat, args.num_hidden, dropout)
        "w_gnn_gc": 0.1 * jax.random.normal(keys[4], (f, nhid), jnp.float32),
        "b_gnn_gc": jnp.zeros((1, nhid), jnp.float32),
        # classifier = nn.Linear(num_hidden, 1)
        "w_cls": 0.1 * jax.random.normal(keys[5], (nhid, 1), jnp.float32),
        "b_cls": 0.01 * jnp.ones((1, 1), jnp.float32),
    }
    return a_hat, x, params


def _reference(a_hat, x, p):
    h_e = a_hat @ (x @ p["w_est_gc"]) + p["b_est_gc"]
    s = h_e @ p["w_est_fc"] + p["b_est_fc"]
    z = a_hat @ (x @ p["w_gnn_gc"]) + p["b_gnn_gc"]
    y = z @ p["w_cls"] + p["b_cls"]
    return y, s


if __name__ == "__main__":
    # TODO(synk): GAT branch of get_model (args.model == 'GAT') and the
    # optimize()/adv training path are not part of forward() and not translated.
    key = jax.random.PRNGKey(0)
    k1, k2 = jax.random.split(key)

    # Case 1: small, single-tile grid.
    N, F, HID_EST, NHID = 64, 32, 16, 32
    a_hat, x, params = _make_example(k1, N, F, HID_EST, NHID)
    y, s = jax.block_until_ready(fairgnn_forward(a_hat, x, params))
    y_ref, s_ref = _reference(a_hat, x, params)
    assert y.shape == (N, 1) and s.shape == (N, 1)
    # bf16 adjacency / XW in the aggregation -> loosened tolerance vs f32 ref.
    assert jnp.allclose(y, y_ref, atol=1e-2, rtol=1e-2), "y mismatch (case 1)"
    assert jnp.allclose(s, s_ref, atol=1e-2, rtol=1e-2), "s mismatch (case 1)"

    # Case 2: non-tile-multiple N with explicit small tiles -> multi-tile grid
    # exercising per-axis padding, the K-accumulator and pl.when init/finalize.
    N2 = 300
    a_hat2, x2, params2 = _make_example(k2, N2, F, HID_EST, NHID)
    y2, s2 = jax.block_until_ready(
        fairgnn_forward(a_hat2, x2, params2, tm=128, tk=128))
    y2_ref, s2_ref = _reference(a_hat2, x2, params2)
    assert y2.shape == (N2, 1) and s2.shape == (N2, 1)
    assert jnp.allclose(y2, y2_ref, atol=1e-2, rtol=1e-2), "y mismatch (case 2)"
    assert jnp.allclose(s2, s2_ref, atol=1e-2, rtol=1e-2), "s mismatch (case 2)"

    # Case 3: default (large) tiles on a small graph -> exercises the tile
    # clamping, the >=2-row-tile (megacore) cap and asymmetric row/col padding.
    y3, s3 = jax.block_until_ready(fairgnn_forward(a_hat2, x2, params2))
    assert jnp.allclose(y3, y2_ref, atol=1e-2, rtol=1e-2), "y mismatch (case 3)"
    assert jnp.allclose(s3, s2_ref, atol=1e-2, rtol=1e-2), "s mismatch (case 3)"

    print("KERNEL_OK")
</pallas_src>

<mosaic_0001>
module attributes {stable_mosaic.version = 11 : i64} {
  func.func @_fairgnn_kernel(%arg0: i32, %arg1: i32, %arg2: memref<128x128xbf16, #tpu.memory_space<vmem>>, %arg3: memref<128x128xbf16, #tpu.memory_space<vmem>>, %arg4: memref<1x128xf32, #tpu.memory_space<vmem>>, %arg5: memref<128x2xf32, #tpu.memory_space<vmem>>, %arg6: memref<1x2xf32, #tpu.memory_space<vmem>>, %arg7: memref<128x2xf32, #tpu.memory_space<vmem>>, %arg8: memref<128x128xf32, #tpu.memory_space<vmem>>) attributes {dimension_semantics = [#tpu.dimension_semantics<parallel>, #tpu.dimension_semantics<arbitrary>], iteration_bounds = array<i64: 1, 1>, scalar_prefetch = 0 : i64, scratch_operands = 1 : i64, tpu.core_type = #tpu.core_type<tc>, window_params = [{transform_indices = @transform_0, window_bounds = array<i64: 128, 128>}, {transform_indices = @transform_1, window_bounds = array<i64: 128, 128>}, {pipeline_mode = #tpu.pipeline_mode<synchronous>, transform_indices = @transform_2, window_bounds = array<i64: 1, 128>}, {pipeline_mode = #tpu.pipeline_mode<synchronous>, transform_indices = @transform_3, window_bounds = array<i64: 128, 2>}, {pipeline_mode = #tpu.pipeline_mode<synchronous>, transform_indices = @transform_4, window_bounds = array<i64: 1, 2>}, {transform_indices = @transform_5, window_bounds = array<i64: 128, 2>}]} {
    %c0_i32 = arith.constant 0 : i32
    %0 = arith.cmpi eq, %arg1, %c0_i32 : i32
    %1 = arith.extui %0 : i1 to i32
    %c0_i32_0 = arith.constant 0 : i32
    %2 = arith.cmpi ne, %1, %c0_i32_0 : i32
    scf.if %2 {
      %cst_10 = arith.constant 0.000000e+00 : f32
      %12 = vector.broadcast %cst_10 : f32 to vector<128x128xf32>
      %c0_11 = arith.constant 0 : index
      %c0_12 = arith.constant 0 : index
      %13 = vector.load %arg8[%c0_11, %c0_12] : memref<128x128xf32, #tpu.memory_space<vmem>>, vector<128x128xf32>
      tpu.vector_store %arg8[%c0_11, %c0_12], %12 {strides = array<i32>} : memref<128x128xf32, #tpu.memory_space<vmem>>, vector<128x128xf32>,
    } else {
    }
    %c0 = arith.constant 0 : index
    %c0_1 = arith.constant 0 : index
    %3 = vector.load %arg8[%c0, %c0_1] : memref<128x128xf32, #tpu.memory_space<vmem>>, vector<128x128xf32>
    %c0_2 = arith.constant 0 : index
    %c0_3 = arith.constant 0 : index
    %4 = vector.load %arg2[%c0_2, %c0_3] : memref<128x128xbf16, #tpu.memory_space<vmem>>, vector<128x128xbf16>
    %c0_4 = arith.constant 0 : index
    %c0_5 = arith.constant 0 : index
    %5 = vector.load %arg3[%c0_4, %c0_5] : memref<128x128xbf16, #tpu.memory_space<vmem>>, vector<128x128xbf16>
    %cst = arith.constant dense<0.000000e+00> : vector<128x128xf32>
    %6 = tpu.matmul %4, %5, %cst {dimension_numbers = #tpu.dot_dimension_numbers<[1], [0], [0], [1], [0, 0, 1, 1], [], []>} : vector<128x128xbf16>, vector<128x128xbf16>, vector<128x128xf32> -> vector<128x128xf32>
    %7 = arith.addf %3, %6 : vector<128x128xf32>
    %c0_6 = arith.constant 0 : index
    %c0_7 = arith.constant 0 : index
    %8 = vector.load %arg8[%c0_6, %c0_7] : memref<128x128xf32, #tpu.memory_space<vmem>>, vector<128x128xf32>
    tpu.vector_store %arg8[%c0_6, %c0_7], %7 {strides = array<i32>} : memref<128x128xf32, #tpu.memory_space<vmem>>, vector<128x128xf32>,
    %c0_i32_8 = arith.constant 0 : i32
    %9 = arith.cmpi eq, %arg1, %c0_i32_8 : i32
    %10 = arith.extui %9 : i1 to i32
    %c0_i32_9 = arith.constant 0 : i32
    %11 = arith.cmpi ne, %10, %c0_i32_9 : i32
    scf.if %11 {
      %c0_10 = arith.constant 0 : index
      %c0_11 = arith.constant 0 : index
      %12 = vector.load %arg8[%c0_10, %c0_11] : memref<128x128xf32, #tpu.memory_space<vmem>>, vector<128x128xf32>
      %c0_12 = arith.constant 0 : index
      %c0_13 = arith.constant 0 : index
      %13 = vector.load %arg4[%c0_12, %c0_13] : memref<1x128xf32, #tpu.memory_space<vmem>>, vector<1x128xf32>
      %14 = vector.broadcast %13 : vector<1x128xf32> to vector<128x128xf32>
      %15 = arith.addf %12, %14 : vector<128x128xf32>
      %c0_14 = arith.constant 0 : index
      %c0_15 = arith.constant 0 : index
      %16 = vector.load %arg5[%c0_14, %c0_15] : memref<128x2xf32, #tpu.memory_space<vmem>>, vector<128x2xf32>
      %cst_16 = arith.constant dense<0.000000e+00> : vector<128x2xf32>
      %17 = tpu.matmul %15, %16, %cst_16 {dimension_numbers = #tpu.dot_dimension_numbers<[1], [0], [0], [1], [0, 0, 1, 1], [], []>} : vector<128x128xf32>, vector<128x2xf32>, vector<128x2xf32> -> vector<128x2xf32>
      %c0_17 = arith.constant 0 : index
      %c0_18 = arith.constant 0 : index
      %18 = vector.load %arg6[%c0_17, %c0_18] : memref<1x2xf32, #tpu.memory_space<vmem>>, vector<1x2xf32>
      %19 = vector.broadcast %18 : vector<1x2xf32> to vector<128x2xf32>
      %20 = arith.addf %17, %19 : vector<128x2xf32>
      %c0_19 = arith.constant 0 : index
      %c0_20 = arith.constant 0 : index
      %21 = vector.load %arg7[%c0_19, %c0_20] : memref<128x2xf32, #tpu.memory_space<vmem>>, vector<128x2xf32>
      tpu.vector_store %arg7[%c0_19, %c0_20], %20 {strides = array<i32>} : memref<128x2xf32, #tpu.memory_space<vmem>>, vector<128x2xf32>,
    } else {
    }
    return
  }
  func.func @transform_0(%arg0: i32, %arg1: i32) -> (i32, i32) {
    %c0_i32 = arith.constant 0 : i32
    return %arg0, %arg1 : i32, i32
  }
  func.func @transform_1(%arg0: i32, %arg1: i32) -> (i32, i32) {
    %c0_i32 = arith.constant 0 : i32
    %c0_i32_0 = arith.constant 0 : i32
    return %arg1, %c0_i32 : i32, i32
  }
  func.func @transform_2(%arg0: i32, %arg1: i32) -> (i32, i32) {
    %c0_i32 = arith.constant 0 : i32
    %c0_i32_0 = arith.constant 0 : i32
    %c0_i32_1 = arith.constant 0 : i32
    return %c0_i32, %c0_i32_0 : i32, i32
  }
  func.func @transform_3(%arg0: i32, %arg1: i32) -> (i32, i32) {
    %c0_i32 = arith.constant 0 : i32
    %c0_i32_0 = arith.constant 0 : i32
    %c0_i32_1 = arith.constant 0 : i32
    return %c0_i32, %c0_i32_0 : i32, i32
  }
  func.func @transform_4(%arg0: i32, %arg1: i32) -> (i32, i32) {
    %c0_i32 = arith.constant 0 : i32
    %c0_i32_0 = arith.constant 0 : i32
    %c0_i32_1 = arith.constant 0 : i32
    return %c0_i32, %c0_i32_0 : i32, i32
  }
  func.func @transform_5(%arg0: i32, %arg1: i32) -> (i32, i32) {
    %c0_i32 = arith.constant 0 : i32
    %c0_i32_0 = arith.constant 0 : i32
    return %arg0, %c0_i32 : i32, i32
  }
}

</mosaic_0001>

<llo_original>
// kernel: tpu_custom_call.1
$region0: #{tpu_custom_call.1}
  #allocation0 [shape = 'u32[]', space=smem, size = 0x4, offset = 0x4, fixed_abs, tag = 'smem constant byte address 0x4 - core index']
  #allocation1 [shape = 'u32[144,128]{1,0:T(1,128)}', space=vmem, size = 0x12000, scoped, tag = 'internal scratch']
  #allocation2 [shape = 'f32[128,128]{1,0:T(8,128)}', space=vmem, size = 0x10000, scoped, tag = 'scratch operand']
  %s0 = inlined_call_operand.vmem [shape: bf16[128,128], index: 0, kind: input, shape index: {}]
  %s1 = inlined_call_operand.vmem [shape: bf16[128,128], index: 1, kind: input, shape index: {}]
  %s2 = inlined_call_operand.vmem [shape: f32[1,128], index: 2, kind: input, shape index: {}]
  %s3 = inlined_call_operand.vmem [shape: f32[128,2], index: 3, kind: input, shape index: {}]
  %s4 = inlined_call_operand.vmem [shape: f32[1,2], index: 4, kind: input, shape index: {}]
  %s5 = inlined_call_operand.vmem [shape: f32[128,2], index: 5, kind: output, shape index: {}]
  %s6 = sld [smem:[#allocation0]]
  $region38: #{tpu_custom_call.1} parent=0
    _
  %s8 = ssub.s32 1, %s6
  %s9 = scalar_select 0, %s8, %s6
  // Predicated region
  $region2: #{tpu_custom_call.1} parent=0 // pred_check
    _
  $region3: #{tpu_custom_call.1} parent=0 // pred_check_branch
    %11 = sbr.rel (0) target = $region5
  $region4: #{tpu_custom_call.1} parent=0 // pred_region
    _
  $region5: #{tpu_custom_call.1} parent=0 // pred_fallthru
    _
  // Predicated region
  $region6: #{tpu_custom_call.1} parent=0 // pred_check
    _
  $region7: #{tpu_custom_call.1} parent=0 // pred_check_branch
    %13 = sbr.rel (0) target = $region9
  $region8: #{tpu_custom_call.1} parent=0 // pred_region
    _
  $region9: #{tpu_custom_call.1} parent=0 // pred_fallthru
    _
  // Predicated region
  $region10: #{tpu_custom_call.1} parent=0 // pred_check
    _
  $region11: #{tpu_custom_call.1} parent=0 // pred_check_branch
    %15 = sbr.rel (0) target = $region13
  $region12: #{tpu_custom_call.1} parent=0 // pred_region
    _
  $region13: #{tpu_custom_call.1} parent=0 // pred_fallthru
    _
  // Predicated region
  $region14: #{tpu_custom_call.1} parent=0 // pred_check
    _
  $region15: #{tpu_custom_call.1} parent=0 // pred_check_branch
    %17 = sbr.rel (0) target = $region17
  $region16: #{tpu_custom_call.1} parent=0 // pred_region
    _
  $region17: #{tpu_custom_call.1} parent=0 // pred_fallthru
    _
  // Predicated region
  $region18: #{tpu_custom_call.1} parent=0 // pred_check
    _
  $region19: #{tpu_custom_call.1} parent=0 // pred_check_branch
    %19 = sbr.rel (0) target = $region21
  $region20: #{tpu_custom_call.1} parent=0 // pred_region
    _
  $region21: #{tpu_custom_call.1} parent=0 // pred_fallthru
    _
  %p21 = scmp.eq.s32.totalorder 0, 0
  // Predicated region
  $region22: #{tpu_custom_call.1} parent=0 // pred_check
    %p22 = pneg %p21
  $region23: #{tpu_custom_call.1} parent=0 // pred_check_branch
    %24 = sbr.rel (%p22) target = $region25
  $region24: #{tpu_custom_call.1} parent=0 // pred_region
    %25 = vst [vmem:[#allocation2] sm:$0xff] 0.0
    %26 = vst [vmem:[#allocation2 + $0x8] sm:$0xff] 0.0
    %27 = vst [vmem:[#allocation2 + $0x10] sm:$0xff] 0.0
    %28 = vst [vmem:[#allocation2 + $0x18] sm:$0xff] 0.0
    %29 = vst [vmem:[#allocation2 + $0x20] sm:$0xff] 0.0
    %30 = vst [vmem:[#allocation2 + $0x28] sm:$0xff] 0.0
    %31 = vst [vmem:[#allocation2 + $0x30] sm:$0xff] 0.0
    %32 = vst [vmem:[#allocation2 + $0x38] sm:$0xff] 0.0
    %33 = vst [vmem:[#allocation2 + $0x40] sm:$0xff] 0.0
    %34 = vst [vmem:[#allocation2 + $0x48] sm:$0xff] 0.0
    %35 = vst [vmem:[#allocation2 + $0x50] sm:$0xff] 0.0
    %36 = vst [vmem:[#allocation2 + $0x58] sm:$0xff] 0.0
    %37 = vst [vmem:[#allocation2 + $0x60] sm:$0xff] 0.0
    %38 = vst [vmem:[#allocation2 + $0x68] sm:$0xff] 0.0
    %39 = vst [vmem:[#allocation2 + $0x70] sm:$0xff] 0.0
    %40 = vst [vmem:[#allocation2 + $0x78] sm:$0xff] 0.0
  $region25: #{tpu_custom_call.1} parent=0 // pred_fallthru
    _
  %v41 = vld [vmem:[#allocation2] sm:$0xff]
  %v42 = vld [vmem:[#allocation2 + $0x8] sm:$0xff]
  %v43 = vld [vmem:[#allocation2 + $0x10] sm:$0xff]
  %v44 = vld [vmem:[#allocation2 + $0x18] sm:$0xff]
  %v45 = vld [vmem:[#allocation2 + $0x20] sm:$0xff]
  %v46 = vld [vmem:[#allocation2 + $0x28] sm:$0xff]
  %v47 = vld [vmem:[#allocation2 + $0x30] sm:$0xff]
  %v48 = vld [vmem:[#allocation2 + $0x38] sm:$0xff]
  %v49 = vld [vmem:[#allocation2 + $0x40] sm:$0xff]
  %v50 = vld [vmem:[#allocation2 + $0x48] sm:$0xff]
  %v51 = vld [vmem:[#allocation2 + $0x50] sm:$0xff]
  %v52 = vld [vmem:[#allocation2 + $0x58] sm:$0xff]
  %v53 = vld [vmem:[#allocation2 + $0x60] sm:$0xff]
  %v54 = vld [vmem:[#allocation2 + $0x68] sm:$0xff]
  %v55 = vld [vmem:[#allocation2 + $0x70] sm:$0xff]
  %v56 = vld [vmem:[#allocation2 + $0x78] sm:$0xff]
  %v57 = vld [vmem:[%s0] sm:$0xf]
  %v58 = vld [vmem:[%s0 + $0x4] sm:$0xf]
  %v59 = vld [vmem:[%s0 + $0x8] sm:$0xf]
  %v60 = vld [vmem:[%s0 + $0xc] sm:$0xf]
  %v61 = vld [vmem:[%s0 + $0x10] sm:$0xf]
  %v62 = vld [vmem:[%s0 + $0x14] sm:$0xf]
  %v63 = vld [vmem:[%s0 + $0x18] sm:$0xf]
  %v64 = vld [vmem:[%s0 + $0x1c] sm:$0xf]
  %v65 = vld [vmem:[%s0 + $0x20] sm:$0xf]
  %v66 = vld [vmem:[%s0 + $0x24] sm:$0xf]
  %v67 = vld [vmem:[%s0 + $0x28] sm:$0xf]
  %v68 = vld [vmem:[%s0 + $0x2c] sm:$0xf]
  %v69 = vld [vmem:[%s0 + $0x30] sm:$0xf]
  %v70 = vld [vmem:[%s0 + $0x34] sm:$0xf]
  %v71 = vld [vmem:[%s0 + $0x38] sm:$0xf]
  %v72 = vld [vmem:[%s0 + $0x3c] sm:$0xf]
  %v73 = vld [vmem:[%s1] sm:$0xf]
  %v74 = vld [vmem:[%s1 + $0x4] sm:$0xf]
  %v75 = vld [vmem:[%s1 + $0x8] sm:$0xf]
  %v76 = vld [vmem:[%s1 + $0xc] sm:$0xf]
  %v77 = vld [vmem:[%s1 + $0x10] sm:$0xf]
  %v78 = vld [vmem:[%s1 + $0x14] sm:$0xf]
  %v79 = vld [vmem:[%s1 + $0x18] sm:$0xf]
  %v80 = vld [vmem:[%s1 + $0x1c] sm:$0xf]
  %v81 = vld [vmem:[%s1 + $0x20] sm:$0xf]
  %v82 = vld [vmem:[%s1 + $0x24] sm:$0xf]
  %v83 = vld [vmem:[%s1 + $0x28] sm:$0xf]
  %v84 = vld [vmem:[%s1 + $0x2c] sm:$0xf]
  %v85 = vld [vmem:[%s1 + $0x30] sm:$0xf]
  %v86 = vld [vmem:[%s1 + $0x34] sm:$0xf]
  %v87 = vld [vmem:[%s1 + $0x38] sm:$0xf]
  %v88 = vld [vmem:[%s1 + $0x3c] sm:$0xf]
  %v105 = vunpack.c.l.b16 %v57
  %v106 = vunpack.c.l.b16 %v58
  %v107 = vunpack.c.l.b16 %v59
  %v108 = vunpack.c.l.b16 %v60
  %v109 = vunpack.c.l.b16 %v61
  %v110 = vunpack.c.l.b16 %v62
  %v111 = vunpack.c.l.b16 %v63
  %v112 = vunpack.c.l.b16 %v64
  %v113 = vunpack.c.l.b16 %v65
  %v114 = vunpack.c.l.b16 %v66
  %v115 = vunpack.c.l.b16 %v67
  %v116 = vunpack.c.l.b16 %v68
  %v117 = vunpack.c.l.b16 %v69
  %v118 = vunpack.c.l.b16 %v70
  %v119 = vunpack.c.l.b16 %v71
  %v120 = vunpack.c.l.b16 %v72
  %v121 = vpack.c.b16 %v106, %v105
  %v122 = vpack.c.b16 %v108, %v107
  %v123 = vpack.c.b16 %v110, %v109
  %v124 = vpack.c.b16 %v112, %v111
  %v125 = vpack.c.b16 %v114, %v113
  %v126 = vpack.c.b16 %v116, %v115
  %v127 = vpack.c.b16 %v118, %v117
  %v128 = vpack.c.b16 %v120, %v119
  %v153 = vunpack.c.l.b16 %v73
  %v154 = vunpack.c.l.b16 %v74
  %v155 = vunpack.c.l.b16 %v75
  %v156 = vunpack.c.l.b16 %v76
  %v157 = vunpack.c.l.b16 %v77
  %v158 = vunpack.c.l.b16 %v78
  %v159 = vunpack.c.l.b16 %v79
  %v160 = vunpack.c.l.b16 %v80
  %v161 = vunpack.c.l.b16 %v81
  %v162 = vunpack.c.l.b16 %v82
  %v163 = vunpack.c.l.b16 %v83
  %v164 = vunpack.c.l.b16 %v84
  %v165 = vunpack.c.l.b16 %v85
  %v166 = vunpack.c.l.b16 %v86
  %v167 = vunpack.c.l.b16 %v87
  %v168 = vunpack.c.l.b16 %v88
  %v169 = vpack.c.b16 %v154, %v153
  %v170 = vpack.c.b16 %v156, %v155
  %v171 = vpack.c.b16 %v158, %v157
  %v172 = vpack.c.b16 %v160, %v159
  %v173 = vpack.c.b16 %v162, %v161
  %v174 = vpack.c.b16 %v164, %v163
  %v175 = vpack.c.b16 %v166, %v165
  %v176 = vpack.c.b16 %v168, %v167
  %185 = vmatprep.subr.bf16.mxu0 0
  %186 = vmatpush1.bf16.msra.mxu0 %v169
  %187 = vmatprep.subr.bf16.mxu0 0
  %188 = vmatpush1.bf16.msra.mxu0 %v170
  %189 = vmatprep.subr.bf16.mxu0 0
  %190 = vmatpush1.bf16.msra.mxu0 %v171
  %191 = vmatprep.subr.bf16.mxu0 0
  %192 = vmatpush1.bf16.msra.mxu0 %v172
  %193 = vmatprep.subr.bf16.mxu0 0
  %194 = vmatpush1.bf16.msra.mxu0 %v173
  %195 = vmatprep.subr.bf16.mxu0 0
  %196 = vmatpush1.bf16.msra.mxu0 %v174
  %197 = vmatprep.subr.bf16.mxu0 0
  %198 = vmatpush1.bf16.msra.mxu0 %v175
  %199 = vmatprep.subr.bf16.mxu0 0
  %200 = vmatpush1.bf16.msra.mxu0 %v176
  %201 = vmatprep.subr.bf16.mxu0 0
  %202 = vmatpush1.bf16.msra.mxu0 0
  %203 = vmatprep.subr.bf16.mxu0 0
  %204 = vmatpush1.bf16.msra.mxu0 0
  %205 = vmatprep.subr.bf16.mxu0 0
  %206 = vmatpush1.bf16.msra.mxu0 0
  %207 = vmatprep.subr.bf16.mxu0 0
  %208 = vmatpush1.bf16.msra.mxu0 0
  %209 = vmatprep.subr.bf16.mxu0 0
  %210 = vmatpush1.bf16.msra.mxu0 0
  %211 = vmatprep.subr.bf16.mxu0 0
  %212 = vmatpush1.bf16.msra.mxu0 0
  %213 = vmatprep.subr.bf16.mxu0 0
  %214 = vmatpush1.bf16.msra.mxu0 0
  %215 = vmatprep.subr.bf16.mxu0 0
  %216 = vmatpush1.bf16.msra.mxu0 0
  %217 = vmatprep.mubr.bf16.mxu0 0
  %218 = vmatmul.mubr.bf16.gmra.mrb[0].mxu0 %v121
  %v219 = vpop.f32.mrb[0].mxu0
  %v220 = vadd.f32 0.0, %v219
  %v221 = vpop.f32.mrb[0].mxu0
  %v222 = vpop.f32.mrb[0].mxu0
  %v223 = vadd.f32 0.0, %v222
  %v224 = vpop.f32.mrb[0].mxu0
  %225 = vmatprep.mubr.bf16.mxu0 0
  %226 = vmatmul.mubr.bf16.gmra.mrb[0].mxu0 %v122
  %v227 = vpop.f32.mrb[0].mxu0
  %v228 = vadd.f32 0.0, %v227
  %v229 = vpop.f32.mrb[0].mxu0
  %v230 = vpop.f32.mrb[0].mxu0
  %v231 = vadd.f32 0.0, %v230
  %v232 = vpop.f32.mrb[0].mxu0
  %233 = vmatprep.mubr.bf16.mxu0 0
  %234 = vmatmul.mubr.bf16.gmra.mrb[0].mxu0 %v123
  %v235 = vpop.f32.mrb[0].mxu0
  %v236 = vadd.f32 0.0, %v235
  %v237 = vpop.f32.mrb[0].mxu0
  %v238 = vpop.f32.mrb[0].mxu0
  %v239 = vadd.f32 0.0, %v238
  %v240 = vpop.f32.mrb[0].mxu0
  %241 = vmatprep.mubr.bf16.mxu0 0
  %242 = vmatmul.mubr.bf16.gmra.mrb[0].mxu0 %v124
  %v243 = vpop.f32.mrb[0].mxu0
  %v244 = vadd.f32 0.0, %v243
  %v245 = vpop.f32.mrb[0].mxu0
  %v246 = vpop.f32.mrb[0].mxu0
  %v247 = vadd.f32 0.0, %v246
  %v248 = vpop.f32.mrb[0].mxu0
  %249 = vmatprep.mubr.bf16.mxu0 0
  %250 = vmatmul.mubr.bf16.gmra.mrb[0].mxu0 %v125
  %v251 = vpop.f32.mrb[0].mxu0
  %v252 = vadd.f32 0.0, %v251
  %v253 = vpop.f32.mrb[0].mxu0
  %v254 = vpop.f32.mrb[0].mxu0
  %v255 = vadd.f32 0.0, %v254
  %v256 = vpop.f32.mrb[0].mxu0
  %257 = vmatprep.mubr.bf16.mxu0 0
  %258 = vmatmul.mubr.bf16.gmra.mrb[0].mxu0 %v126
  %v259 = vpop.f32.mrb[0].mxu0
  %v260 = vadd.f32 0.0, %v259
  %v261 = vpop.f32.mrb[0].mxu0
  %v262 = vpop.f32.mrb[0].mxu0
  %v263 = vadd.f32 0.0, %v262
  %v264 = vpop.f32.mrb[0].mxu0
  %265 = vmatprep.mubr.bf16.mxu0 0
  %266 = vmatmul.mubr.bf16.gmra.mrb[0].mxu0 %v127
  %v267 = vpop.f32.mrb[0].mxu0
  %v268 = vadd.f32 0.0, %v267
  %v269 = vpop.f32.mrb[0].mxu0
  %v270 = vpop.f32.mrb[0].mxu0
  %v271 = vadd.f32 0.0, %v270
  %v272 = vpop.f32.mrb[0].mxu0
  %273 = vmatprep.mubr.bf16.mxu0 0
  %274 = vmatmul.mubr.bf16.gmra.mrb[0].mxu0 %v128
  %v275 = vpop.f32.mrb[0].mxu0
  %v276 = vadd.f32 0.0, %v275
  %v277 = vpop.f32.mrb[0].mxu0
  %v278 = vpop.f32.mrb[0].mxu0
  %v279 = vadd.f32 0.0, %v278
  %v280 = vpop.f32.mrb[0].mxu0
  %281 = vdwg.mxu0
  %v282 = vadd.f32 %v41, %v220
  %v283 = vadd.f32 %v42, %v223
  %v284 = vadd.f32 %v43, %v228
  %v285 = vadd.f32 %v44, %v231
  %v286 = vadd.f32 %v45, %v236
  %v287 = vadd.f32 %v46, %v239
  %v288 = vadd.f32 %v47, %v244
  %v289 = vadd.f32 %v48, %v247
  %v290 = vadd.f32 %v49, %v252
  %v291 = vadd.f32 %v50, %v255
  %v292 = vadd.f32 %v51, %v260
  %v293 = vadd.f32 %v52, %v263
  %v294 = vadd.f32 %v53, %v268
  %v295 = vadd.f32 %v54, %v271
  %v296 = vadd.f32 %v55, %v276
  %v297 = vadd.f32 %v56, %v279
  %298 = vst [vmem:[#allocation2] sm:$0xff] %v282
  %299 = vst [vmem:[#allocation2 + $0x8] sm:$0xff] %v283
  %300 = vst [vmem:[#allocation2 + $0x10] sm:$0xff] %v284
  %301 = vst [vmem:[#allocation2 + $0x18] sm:$0xff] %v285
  %302 = vst [vmem:[#allocation2 + $0x20] sm:$0xff] %v286
  %303 = vst [vmem:[#allocation2 + $0x28] sm:$0xff] %v287
  %304 = vst [vmem:[#allocation2 + $0x30] sm:$0xff] %v288
  %305 = vst [vmem:[#allocation2 + $0x38] sm:$0xff] %v289
  %306 = vst [vmem:[#allocation2 + $0x40] sm:$0xff] %v290
  %307 = vst [vmem:[#allocation2 + $0x48] sm:$0xff] %v291
  %308 = vst [vmem:[#allocation2 + $0x50] sm:$0xff] %v292
  %309 = vst [vmem:[#allocation2 + $0x58] sm:$0xff] %v293
  %310 = vst [vmem:[#allocation2 + $0x60] sm:$0xff] %v294
  %311 = vst [vmem:[#allocation2 + $0x68] sm:$0xff] %v295
  %312 = vst [vmem:[#allocation2 + $0x70] sm:$0xff] %v296
  %313 = vst [vmem:[#allocation2 + $0x78] sm:$0xff] %v297
  // Predicated region
  $region26: #{tpu_custom_call.1} parent=0 // pred_check
    %p314 = pneg %p21
  $region27: #{tpu_custom_call.1} parent=0 // pred_check_branch
    %316 = sbr.rel (%p314) target = $region29
  $region28: #{tpu_custom_call.1} parent=0 // pred_region
    %v317 = vld [vmem:[#allocation2] sm:$0xff]
    %v318 = vld [vmem:[#allocation2 + $0x8] sm:$0xff]
    %v319 = vld [vmem:[#allocation2 + $0x10] sm:$0xff]
    %v320 = vld [vmem:[#allocation2 + $0x18] sm:$0xff]
    %v321 = vld [vmem:[#allocation2 + $0x20] sm:$0xff]
    %v322 = vld [vmem:[#allocation2 + $0x28] sm:$0xff]
    %v323 = vld [vmem:[#allocation2 + $0x30] sm:$0xff]
    %v324 = vld [vmem:[#allocation2 + $0x38] sm:$0xff]
    %v325 = vld [vmem:[#allocation2 + $0x40] sm:$0xff]
    %v326 = vld [vmem:[#allocation2 + $0x48] sm:$0xff]
    %v327 = vld [vmem:[#allocation2 + $0x50] sm:$0xff]
    %v328 = vld [vmem:[#allocation2 + $0x58] sm:$0xff]
    %v329 = vld [vmem:[#allocation2 + $0x60] sm:$0xff]
    %v330 = vld [vmem:[#allocation2 + $0x68] sm:$0xff]
    %v331 = vld [vmem:[#allocation2 + $0x70] sm:$0xff]
    %v332 = vld [vmem:[#allocation2 + $0x78] sm:$0xff]
    %v333 = vld [vmem:[%s2] sm:$0x1]
    %v335 = vlaneseq
    %v336 = vshrl.u32 %v335, 7
    %v337 = vsub.s32 0, %v336
    %v338 = vrot.slane %v333, %v337
    %v340 = vadd.f32 %v317, %v338
    %v341 = vadd.f32 %v318, %v338
    %v342 = vadd.f32 %v319, %v338
    %v343 = vadd.f32 %v320, %v338
    %v344 = vadd.f32 %v321, %v338
    %v345 = vadd.f32 %v322, %v338
    %v346 = vadd.f32 %v323, %v338
    %v347 = vadd.f32 %v324, %v338
    %v348 = vadd.f32 %v325, %v338
    %v349 = vadd.f32 %v326, %v338
    %v350 = vadd.f32 %v327, %v338
    %v351 = vadd.f32 %v328, %v338
    %v352 = vadd.f32 %v329, %v338
    %v353 = vadd.f32 %v330, %v338
    %v354 = vadd.f32 %v331, %v338
    %v355 = vadd.f32 %v332, %v338
    %v356 = vld [vmem:[%s3] sm:$0xff]
    %v357 = vld [vmem:[%s3 + $0x8] sm:$0xff]
    %v358 = vld [vmem:[%s3 + $0x10] sm:$0xff]
    %v359 = vld [vmem:[%s3 + $0x18] sm:$0xff]
    %v360 = vld [vmem:[%s3 + $0x20] sm:$0xff]
    %v361 = vld [vmem:[%s3 + $0x28] sm:$0xff]
    %v362 = vld [vmem:[%s3 + $0x30] sm:$0xff]
    %v363 = vld [vmem:[%s3 + $0x38] sm:$0xff]
    %v364 = vld [vmem:[%s3 + $0x40] sm:$0xff]
    %v365 = vld [vmem:[%s3 + $0x48] sm:$0xff]
    %v366 = vld [vmem:[%s3 + $0x50] sm:$0xff]
    %v367 = vld [vmem:[%s3 + $0x58] sm:$0xff]
    %v368 = vld [vmem:[%s3 + $0x60] sm:$0xff]
    %v369 = vld [vmem:[%s3 + $0x68] sm:$0xff]
    %v370 = vld [vmem:[%s3 + $0x70] sm:$0xff]
    %v371 = vld [vmem:[%s3 + $0x78] sm:$0xff]
    %v372 = vld [vmem:[%s4] sm:$0x1]
    %v374 = vlaneseq
    %v375 = vshrl.u32 %v374, 7
    %v376 = vsub.s32 0, %v375
    %v377 = vrot.slane %v372, %v376
    %379 = vmatprep.subr.mxu0 0.0
    %380 = vmatpush1.msra.mxu0 %v356
    %381 = vmatprep.subr.mxu0 0.0
    %382 = vmatpush1.msra.mxu0 %v357
    %383 = vmatprep.subr.mxu0 0.0
    %384 = vmatpush1.msra.mxu0 %v358
    %385 = vmatprep.subr.mxu0 0.0
    %386 = vmatpush1.msra.mxu0 %v359
    %387 = vmatprep.subr.mxu0 0.0
    %388 = vmatpush1.msra.mxu0 %v360
    %389 = vmatprep.subr.mxu0 0.0
    %390 = vmatpush1.msra.mxu0 %v361
    %391 = vmatprep.subr.mxu0 0.0
    %392 = vmatpush1.msra.mxu0 %v362
    %393 = vmatprep.subr.mxu0 0.0
    %394 = vmatpush1.msra.mxu0 %v363
    %395 = vmatprep.subr.mxu0 0.0
    %396 = vmatpush1.msra.mxu0 %v364
    %397 = vmatprep.subr.mxu0 0.0
    %398 = vmatpush1.msra.mxu0 %v365
    %399 = vmatprep.subr.mxu0 0.0
    %400 = vmatpush1.msra.mxu0 %v366
    %401 = vmatprep.subr.mxu0 0.0
    %402 = vmatpush1.msra.mxu0 %v367
    %403 = vmatprep.subr.mxu0 0.0
    %404 = vmatpush1.msra.mxu0 %v368
    %405 = vmatprep.subr.mxu0 0.0
    %406 = vmatpush1.msra.mxu0 %v369
    %407 = vmatprep.subr.mxu0 0.0
    %408 = vmatpush1.msra.mxu0 %v370
    %409 = vmatprep.subr.mxu0 0.0
    %410 = vmatpush1.msra.mxu0 %v371
    %411 = vmatprep.subr.mxu0 0.0
    %412 = vmatpush1.msra.mxu0 0.0
    %413 = vmatprep.subr.mxu0 0.0
    %414 = vmatpush1.msra.mxu0 0.0
    %415 = vmatprep.subr.mxu0 0.0
    %416 = vmatpush1.msra.mxu0 0.0
    %417 = vmatprep.subr.mxu0 0.0
    %418 = vmatpush1.msra.mxu0 0.0
    %419 = vmatprep.subr.mxu0 0.0
    %420 = vmatpush1.msra.mxu0 0.0
    %421 = vmatprep.subr.mxu0 0.0
    %422 = vmatpush1.msra.mxu0 0.0
    %423 = vmatprep.subr.mxu0 0.0
    %424 = vmatpush1.msra.mxu0 0.0
    %425 = vmatprep.subr.mxu0 0.0
    %426 = vmatpush1.msra.mxu0 0.0
    %427 = vmatprep.subr.mxu0 0.0
    %428 = vmatpush1.msra.mxu0 0.0
    %429 = vmatprep.subr.mxu0 0.0
    %430 = vmatpush1.msra.mxu0 0.0
    %431 = vmatprep.subr.mxu0 0.0
    %432 = vmatpush1.msra.mxu0 0.0
    %433 = vmatprep.subr.mxu0 0.0
    %434 = vmatpush1.msra.mxu0 0.0
    %435 = vmatprep.subr.mxu0 0.0
    %436 = vmatpush1.msra.mxu0 0.0
    %437 = vmatprep.subr.mxu0 0.0
    %438 = vmatpush1.msra.mxu0 0.0
    %439 = vmatprep.subr.mxu0 0.0
    %440 = vmatpush1.msra.mxu0 0.0
    %441 = vmatprep.subr.mxu0 0.0
    %442 = vmatpush1.msra.mxu0 0.0
    %443 = vmatprep.mubr.f32.mxu0 0.0
    %444 = vmatmul.mubr.f32.gmra.mrb[0].mxu0 %v340
    %v445 = vpop.f32.mrb[0].mxu0
    %v446 = vadd.f32 %v377, %v445
    %v447 = vpop.f32.mrb[0].mxu0
    %448 = vmatprep.mubr.f32.mxu0 0.0
    %449 = vmatmul.mubr.f32.gmra.mrb[0].mxu0 %v341
    %v450 = vpop.f32.mrb[0].mxu0
    %v451 = vadd.f32 %v377, %v450
    %v452 = vpop.f32.mrb[0].mxu0
    %453 = vmatprep.mubr.f32.mxu0 0.0
    %454 = vmatmul.mubr.f32.gmra.mrb[0].mxu0 %v342
    %v455 = vpop.f32.mrb[0].mxu0
    %v456 = vadd.f32 %v377, %v455
    %v457 = vpop.f32.mrb[0].mxu0
    %458 = vmatprep.mubr.f32.mxu0 0.0
    %459 = vmatmul.mubr.f32.gmra.mrb[0].mxu0 %v343
    %v460 = vpop.f32.mrb[0].mxu0
    %v461 = vadd.f32 %v377, %v460
    %v462 = vpop.f32.mrb[0].mxu0
    %463 = vmatprep.mubr.f32.mxu0 0.0
    %464 = vmatmul.mubr.f32.gmra.mrb[0].mxu0 %v344
    %v465 = vpop.f32.mrb[0].mxu0
    %v466 = vadd.f32 %v377, %v465
    %v467 = vpop.f32.mrb[0].mxu0
    %468 = vmatprep.mubr.f32.mxu0 0.0
    %469 = vmatmul.mubr.f32.gmra.mrb[0].mxu0 %v345
    %v470 = vpop.f32.mrb[0].mxu0
    %v471 = vadd.f32 %v377, %v470
    %v472 = vpop.f32.mrb[0].mxu0
    %473 = vmatprep.mubr.f32.mxu0 0.0
    %474 = vmatmul.mubr.f32.gmra.mrb[0].mxu0 %v346
    %v475 = vpop.f32.mrb[0].mxu0
    %v476 = vadd.f32 %v377, %v475
    %v477 = vpop.f32.mrb[0].mxu0
    %478 = vmatprep.mubr.f32.mxu0 0.0
    %479 = vmatmul.mubr.f32.gmra.mrb[0].mxu0 %v347
    %v480 = vpop.f32.mrb[0].mxu0
    %v481 = vadd.f32 %v377, %v480
    %v482 = vpop.f32.mrb[0].mxu0
    %483 = vmatprep.mubr.f32.mxu0 0.0
    %484 = vmatmul.mubr.f32.gmra.mrb[0].mxu0 %v348
    %v485 = vpop.f32.mrb[0].mxu0
    %v486 = vadd.f32 %v377, %v485
    %v487 = vpop.f32.mrb[0].mxu0
    %488 = vmatprep.mubr.f32.mxu0 0.0
    %489 = vmatmul.mubr.f32.gmra.mrb[0].mxu0 %v349
    %v490 = vpop.f32.mrb[0].mxu0
    %v491 = vadd.f32 %v377, %v490
    %v492 = vpop.f32.mrb[0].mxu0
    %493 = vmatprep.mubr.f32.mxu0 0.0
    %494 = vmatmul.mubr.f32.gmra.mrb[0].mxu0 %v350
    %v495 = vpop.f32.mrb[0].mxu0
    %v496 = vadd.f32 %v377, %v495
    %v497 = vpop.f32.mrb[0].mxu0
    %498 = vmatprep.mubr.f32.mxu0 0.0
    %499 = vmatmul.mubr.f32.gmra.mrb[0].mxu0 %v351
    %v500 = vpop.f32.mrb[0].mxu0
    %v501 = vadd.f32 %v377, %v500
    %v502 = vpop.f32.mrb[0].mxu0
    %503 = vmatprep.mubr.f32.mxu0 0.0
    %504 = vmatmul.mubr.f32.gmra.mrb[0].mxu0 %v352
    %v505 = vpop.f32.mrb[0].mxu0
    %v506 = vadd.f32 %v377, %v505
    %v507 = vpop.f32.mrb[0].mxu0
    %508 = vmatprep.mubr.f32.mxu0 0.0
    %509 = vmatmul.mubr.f32.gmra.mrb[0].mxu0 %v353
    %v510 = vpop.f32.mrb[0].mxu0
    %v511 = vadd.f32 %v377, %v510
    %v512 = vpop.f32.mrb[0].mxu0
    %513 = vmatprep.mubr.f32.mxu0 0.0
    %514 = vmatmul.mubr.f32.gmra.mrb[0].mxu0 %v354
    %v515 = vpop.f32.mrb[0].mxu0
    %v516 = vadd.f32 %v377, %v515
    %v517 = vpop.f32.mrb[0].mxu0
    %518 = vmatprep.mubr.f32.mxu0 0.0
    %519 = vmatmul.mubr.f32.gmra.mrb[0].mxu0 %v355
    %v520 = vpop.f32.mrb[0].mxu0
    %v521 = vadd.f32 %v377, %v520
    %v522 = vpop.f32.mrb[0].mxu0
    %523 = vdwg.mxu0
    %vm524 = vcmask 15360
    %525 = vst.msk [vmem:[%s5] sm:$0xff] %vm524, %v446
    %526 = vst.msk [vmem:[%s5 + $0x8] sm:$0xff] %vm524, %v451
    %527 = vst.msk [vmem:[%s5 + $0x10] sm:$0xff] %vm524, %v456
    %528 = vst.msk [vmem:[%s5 + $0x18] sm:$0xff] %vm524, %v461
    %529 = vst.msk [vmem:[%s5 + $0x20] sm:$0xff] %vm524, %v466
    %530 = vst.msk [vmem:[%s5 + $0x28] sm:$0xff] %vm524, %v471
    %531 = vst.msk [vmem:[%s5 + $0x30] sm:$0xff] %vm524, %v476
    %532 = vst.msk [vmem:[%s5 + $0x38] sm:$0xff] %vm524, %v481
    %533 = vst.msk [vmem:[%s5 + $0x40] sm:$0xff] %vm524, %v486
    %534 = vst.msk [vmem:[%s5 + $0x48] sm:$0xff] %vm524, %v491
    %535 = vst.msk [vmem:[%s5 + $0x50] sm:$0xff] %vm524, %v496
    %536 = vst.msk [vmem:[%s5 + $0x58] sm:$0xff] %vm524, %v501
    %537 = vst.msk [vmem:[%s5 + $0x60] sm:$0xff] %vm524, %v506
    %538 = vst.msk [vmem:[%s5 + $0x68] sm:$0xff] %vm524, %v511
    %539 = vst.msk [vmem:[%s5 + $0x70] sm:$0xff] %vm524, %v516
    %540 = vst.msk [vmem:[%s5 + $0x78] sm:$0xff] %vm524, %v521
  $region29: #{tpu_custom_call.1} parent=0 // pred_fallthru
    _
  // Predicated region
  $region30: #{tpu_custom_call.1} parent=0 // pred_check
    _
  $region31: #{tpu_custom_call.1} parent=0 // pred_check_branch
    %542 = sbr.rel (0) target = $region33
  $region32: #{tpu_custom_call.1} parent=0 // pred_region
    _
  $region33: #{tpu_custom_call.1} parent=0 // pred_fallthru
    _
  // Predicated region
  $region34: #{tpu_custom_call.1} parent=0 // pred_check
    _
  $region35: #{tpu_custom_call.1} parent=0 // pred_check_branch
    %544 = sbr.rel (0) target = $region37
  $region36: #{tpu_custom_call.1} parent=0 // pred_region
    _
  $region37: #{tpu_custom_call.1} parent=0 // pred_fallthru
    _

</llo_original>
